<compile_context>
chip_gen: v7x
topology: tpu7x:2x2x1
jax: 0.10.0
libtpu: 0.0.40
codegen_flags: <defaults>
</compile_context>

<pallas_src>
import functools

import jax
import jax.numpy as jnp
from jax import lax
from jax.experimental import pallas as pl
from jax.experimental.pallas import tpu as pltpu


# ----------------------------------------------------------------------------
# Fused kernel: conv3x3(+bias,+ReLU) -> maxpool2x2 -> conv3x3(+bias)
# One batch element per grid step.  All intermediates stay in VMEM/vregs.
# Activation layout: (C, H*W) with the flattened spatial dim on lanes.
# ----------------------------------------------------------------------------
def _fused_kernel(x_ref, w1_ref, b1_ref, w2_ref, b2_ref, sel_ref, o_ref,
                  xbuf, pbuf, *, h, w, cin, cout1):
    f32 = jnp.float32
    hw = h * w
    hp, wp = h // 2, w // 2
    phw = hp * wp
    pad1 = w + 1
    pad2 = wp + 1

    # ---------------- conv1: 3x3 "same" + bias + ReLU ------------------------
    # Flat zero-padded copy of the (Cin, H*W) image: a 2-D shift by (oy, ox)
    # becomes a read at lane offset oy*W + ox.  Rows that leave the image land
    # in the zero head/tail; column wrap-around is masked.  Only the pad
    # slivers are re-zeroed each step -- the interior is fully overwritten.
    xbuf[:, 0:pad1] = jnp.zeros((cin, pad1), f32)
    xbuf[:, pad1 + hw:pad1 + hw + pad1] = jnp.zeros((cin, pad1), f32)
    xbuf[:, pad1:pad1 + hw] = x_ref[0].astype(f32)

    col1 = lax.broadcasted_iota(jnp.int32, (1, hw), 1) & (w - 1)   # x' = p % W
    left1 = jnp.broadcast_to(col1 >= 1, (cin, hw))        # hoisted broadcasts,
    right1 = jnp.broadcast_to(col1 <= w - 2, (cin, hw))   # reused by 3 taps each

    taps1 = []
    for k in range(9):               # k = 3*dy + dx  (matches wrapper packing)
        oy, ox = k // 3 - 1, k % 3 - 1
        d = oy * w + ox
        shifted = xbuf[:, pad1 + d:pad1 + d + hw]          # (Cin, H*W) load
        if ox == -1:
            shifted = jnp.where(left1, shifted, 0.0)
        elif ox == 1:
            shifted = jnp.where(right1, shifted, 0.0)
        taps1.append(shifted)
    patch1 = jnp.concatenate(taps1, axis=0)                # (9*Cin, H*W) in regs

    y1 = jnp.dot(w1_ref[...], patch1, preferred_element_type=f32) + b1_ref[...]
    y1 = jnp.maximum(y1, 0.0)                              # (Cout1, H*W)

    # ---------------- 2x2 stride-2 max pool ----------------------------------
    # Pair-maxes via XLU rolls on the register-resident y1 (no staging buffer,
    # zero-fill or shifted reloads).  For every lane the compaction matrix
    # keeps (p = 2*(W*i + j), i < H/2, j < W/2) we have p + W + 1 < H*W, so the
    # circular wrap never contaminates a selected lane.  sel is a constant
    # (H*W, Hp*Wp) 0/1 matrix built once in the wrapper.
    r1 = pltpu.roll(y1, hw - 1, axis=1)         # lane p -> y1[p + 1]
    rw = pltpu.roll(y1, hw - w, axis=1)         # lane p -> y1[p + W]
    rw1 = pltpu.roll(y1, hw - w - 1, axis=1)    # lane p -> y1[p + W + 1]
    mm = jnp.maximum(jnp.maximum(y1, r1), jnp.maximum(rw, rw1))
    pooled = jnp.dot(mm, sel_ref[...], preferred_element_type=f32)  # (Cout1, Hp*Wp)

    # ---------------- conv2: 3x3 "same" + bias (no ReLU: dropped by [:-2]) ---
    pbuf[:, 0:pad2] = jnp.zeros((cout1, pad2), f32)
    pbuf[:, pad2 + phw:pad2 + phw + pad2] = jnp.zeros((cout1, pad2), f32)
    pbuf[:, pad2:pad2 + phw] = pooled

    col2 = lax.broadcasted_iota(jnp.int32, (1, phw), 1) & (wp - 1)
    left2 = jnp.broadcast_to(col2 >= 1, (cout1, phw))
    right2 = jnp.broadcast_to(col2 <= wp - 2, (cout1, phw))

    taps2 = []
    for k in range(9):
        oy, ox = k // 3 - 1, k % 3 - 1
        d = oy * wp + ox
        shifted = pbuf[:, pad2 + d:pad2 + d + phw]         # (Cout1, Hp*Wp)
        if ox == -1:
            shifted = jnp.where(left2, shifted, 0.0)
        elif ox == 1:
            shifted = jnp.where(right2, shifted, 0.0)
        taps2.append(shifted)
    patch2 = jnp.concatenate(taps2, axis=0)       # (9*Cout1, Hp*Wp), 8-row aligned

    y2 = jnp.dot(w2_ref[...], patch2, preferred_element_type=f32) + b2_ref[...]
    o_ref[0] = y2.astype(o_ref.dtype)                      # (Cout2, Hp*Wp)


# ----------------------------------------------------------------------------
# Wrapper: packs weights + pool-selection matrix once, launches ONE fused
# pallas_call, and reshapes the lane-major output back to NCHW for free.
# ----------------------------------------------------------------------------
def feedback48_features(x_nchw, w1, b1, w2, b2):
    n, cin, h, w = x_nchw.shape
    cout1, cout2 = w1.shape[3], w2.shape[3]
    hp, wp = h // 2, w // 2
    hw, phw = h * w, hp * wp
    assert h % 2 == 0, "H must be even for the 2x2 pool"
    assert (w & (w - 1)) == 0 and (wp & (wp - 1)) == 0, \
        "W and W/2 must be powers of two"

    # NCHW -> (N, Cin, H*W): contiguous, free reshape (this IS the kernel
    # layout, so there are no NHWC<->NCHW transposes anywhere in the pipeline).
    x_flat = x_nchw.reshape(n, cin, hw)

    # HWIO weights -> (Cout, 9*Cin): k = 3*dy+dx major / cin minor columns,
    # matching the in-kernel tap concatenation order.  Bias as (Cout, 1).
    w1m = jnp.transpose(w1, (3, 0, 1, 2)).reshape(cout1, 9 * cin)
    w2m = jnp.transpose(w2, (3, 0, 1, 2)).reshape(cout2, 9 * cout1)
    b1c = b1.reshape(cout1, 1).astype(jnp.float32)
    b2c = b2.reshape(cout2, 1).astype(jnp.float32)

    # Pool lane-compaction matrix: sel[p, q] = 1 iff p == 2*(W*(q//Wp) + q%Wp).
    q = jnp.arange(phw, dtype=jnp.int32)
    target = 2 * (w * (q // wp) + (q % wp))
    sel = (jnp.arange(hw, dtype=jnp.int32)[:, None] == target[None, :]
           ).astype(jnp.float32)                                   # (H*W, Hp*Wp)

    kernel = functools.partial(_fused_kernel, h=h, w=w, cin=cin, cout1=cout1)
    out_flat = pl.pallas_call(
        kernel,
        out_shape=jax.ShapeDtypeStruct((n, cout2, phw), x_nchw.dtype),
        grid=(n,),
        in_specs=[
            pl.BlockSpec((1, cin, hw), lambda b: (b, 0, 0)),
            pl.BlockSpec((cout1, 9 * cin), lambda b: (0, 0)),
            pl.BlockSpec((cout1, 1), lambda b: (0, 0)),
            pl.BlockSpec((cout2, 9 * cout1), lambda b: (0, 0)),
            pl.BlockSpec((cout2, 1), lambda b: (0, 0)),
            pl.BlockSpec((hw, phw), lambda b: (0, 0)),       # fetched once
        ],
        out_specs=pl.BlockSpec((1, cout2, phw), lambda b: (b, 0, 0)),
        scratch_shapes=[
            pltpu.VMEM((cin, hw + 2 * (w + 1)), jnp.float32),      # flat-padded input
            pltpu.VMEM((cout1, phw + 2 * (wp + 1)), jnp.float32),  # flat-padded pooled act
        ],
        compiler_params=pltpu.CompilerParams(
            dimension_semantics=("parallel",)),              # v7x: batch over 2 TCs
    )(x_flat, w1m, b1c, w2m, b2c, sel)

    # (N, Cout2, Hp*Wp) -> NCHW: contiguous reshape, no transpose needed.
    return out_flat.reshape(n, cout2, hp, wp)


# ----------------------------------------------------------------------------
# Pure-JAX reference (correctness check only).
# ----------------------------------------------------------------------------
def _reference(x_nchw, w1, b1, w2, b2):
    x = jnp.transpose(x_nchw, (0, 2, 3, 1))
    dn = ("NHWC", "HWIO", "NHWC")
    y = lax.conv_general_dilated(x, w1, (1, 1), "SAME", dimension_numbers=dn)
    y = jnp.maximum(y + b1, 0.0)
    n, h, w, c = y.shape
    y = y.reshape(n, h // 2, 2, w // 2, 2, c).max(axis=(2, 4))
    y = lax.conv_general_dilated(y, w2, (1, 1), "SAME", dimension_numbers=dn) + b2
    return jnp.transpose(y, (0, 3, 1, 2))


if __name__ == "__main__":
    key = jax.random.PRNGKey(0)
    kx, k1, k2, k3, k4 = jax.random.split(key, 5)

    # Small deterministic shapes: batch=2, in-channels=4, spatial=16x16.
    x = jax.random.normal(kx, (2, 4, 16, 16), jnp.float32)
    w1 = 0.1 * jax.random.normal(k1, (3, 3, 4, 8), jnp.float32)    # HWIO
    b1 = 0.1 * jax.random.normal(k2, (8,), jnp.float32)
    w2 = 0.1 * jax.random.normal(k3, (3, 3, 8, 16), jnp.float32)   # HWIO
    b2 = 0.1 * jax.random.normal(k4, (16,), jnp.float32)

    out = jax.jit(feedback48_features)(x, w1, b1, w2, b2)
    out = jax.block_until_ready(out)

    ref = _reference(x, w1, b1, w2, b2)
    assert out.shape == (2, 16, 8, 8), out.shape
    # Tolerance absorbs MXU f32 pass / accumulation-order differences across
    # TPU generations; structural/indexing bugs would be O(0.1-1) off.
    assert jnp.allclose(out, ref, atol=1e-2, rtol=1e-2), \
        float(jnp.max(jnp.abs(out - ref)))

    print("KERNEL_OK")
</pallas_src>

<mosaic_0001>
module attributes {stable_mosaic.version = 11 : i64} {
  func.func @_fused_kernel(%arg0: i32, %arg1: memref<1x4x256xf32, #tpu.memory_space<vmem>>, %arg2: memref<8x36xf32, #tpu.memory_space<vmem>>, %arg3: memref<8x1xf32, #tpu.memory_space<vmem>>, %arg4: memref<16x72xf32, #tpu.memory_space<vmem>>, %arg5: memref<16x1xf32, #tpu.memory_space<vmem>>, %arg6: memref<256x64xf32, #tpu.memory_space<vmem>>, %arg7: memref<1x16x64xf32, #tpu.memory_space<vmem>>, %arg8: memref<4x290xf32, #tpu.memory_space<vmem>>, %arg9: memref<8x82xf32, #tpu.memory_space<vmem>>) attributes {dimension_semantics = [#tpu.dimension_semantics<parallel>], iteration_bounds = array<i64: 2>, scalar_prefetch = 0 : i64, scratch_operands = 2 : i64, tpu.core_type = #tpu.core_type<tc>, window_params = [{transform_indices = @transform_0, window_bounds = array<i64: 1, 4, 256>}, {pipeline_mode = #tpu.pipeline_mode<synchronous>, transform_indices = @transform_1, window_bounds = array<i64: 8, 36>}, {pipeline_mode = #tpu.pipeline_mode<synchronous>, transform_indices = @transform_2, window_bounds = array<i64: 8, 1>}, {pipeline_mode = #tpu.pipeline_mode<synchronous>, transform_indices = @transform_3, window_bounds = array<i64: 16, 72>}, {pipeline_mode = #tpu.pipeline_mode<synchronous>, transform_indices = @transform_4, window_bounds = array<i64: 16, 1>}, {pipeline_mode = #tpu.pipeline_mode<synchronous>, transform_indices = @transform_5, window_bounds = array<i64: 256, 64>}, {transform_indices = @transform_6, window_bounds = array<i64: 1, 16, 64>}]} {
    %cst = arith.constant 0.000000e+00 : f32
    %0 = vector.broadcast %cst : f32 to vector<4x17xf32>
    %c0 = arith.constant 0 : index
    %c0_0 = arith.constant 0 : index
    %1 = vector.load %arg8[%c0, %c0_0] : memref<4x290xf32, #tpu.memory_space<vmem>>, vector<4x17xf32>
    tpu.vector_store %arg8[%c0, %c0_0], %0 {strides = array<i32>} : memref<4x290xf32, #tpu.memory_space<vmem>>, vector<4x17xf32>,
    %cst_1 = arith.constant 0.000000e+00 : f32
    %2 = vector.broadcast %cst_1 : f32 to vector<4x17xf32>
    %c0_2 = arith.constant 0 : index
    %c273 = arith.constant 273 : index
    %3 = vector.load %arg8[%c0_2, %c273] : memref<4x290xf32, #tpu.memory_space<vmem>>, vector<4x17xf32>
    tpu.vector_store %arg8[%c0_2, %c273], %2 {strides = array<i32>} : memref<4x290xf32, #tpu.memory_space<vmem>>, vector<4x17xf32>,
    %c0_3 = arith.constant 0 : index
    %c0_4 = arith.constant 0 : index
    %c0_5 = arith.constant 0 : index
    %4 = vector.load %arg1[%c0_3, %c0_4, %c0_5] : memref<1x4x256xf32, #tpu.memory_space<vmem>>, vector<1x4x256xf32>
    %5 = vector.shape_cast %4 : vector<1x4x256xf32> to vector<4x256xf32>
    %c0_6 = arith.constant 0 : index
    %c17 = arith.constant 17 : index
    %6 = vector.load %arg8[%c0_6, %c17] : memref<4x290xf32, #tpu.memory_space<vmem>>, vector<4x256xf32>
    tpu.vector_store %arg8[%c0_6, %c17], %5 {strides = array<i32>} : memref<4x290xf32, #tpu.memory_space<vmem>>, vector<4x256xf32>,
    %7 = tpu.iota {dimensions = array<i32: 1>} : vector<1x256xi32>
    %c15_i32 = arith.constant 15 : i32
    %8 = vector.broadcast %c15_i32 : i32 to vector<1x256xi32>
    %9 = arith.andi %7, %8 : vector<1x256xi32>
    %c1_i32 = arith.constant 1 : i32
    %10 = vector.broadcast %c1_i32 : i32 to vector<1x256xi32>
    %11 = arith.cmpi sge, %9, %10 : vector<1x256xi32>
    %12 = vector.shape_cast %11 : vector<1x256xi1> to vector<1x256xi1>
    %13 = vector.broadcast %12 : vector<1x256xi1> to vector<4x256xi1>
    %c14_i32 = arith.constant 14 : i32
    %14 = vector.broadcast %c14_i32 : i32 to vector<1x256xi32>
    %15 = arith.cmpi sle, %9, %14 : vector<1x256xi32>
    %16 = vector.shape_cast %15 : vector<1x256xi1> to vector<1x256xi1>
    %17 = vector.broadcast %16 : vector<1x256xi1> to vector<4x256xi1>
    %c0_7 = arith.constant 0 : index
    %c0_8 = arith.constant 0 : index
    %18 = vector.load %arg8[%c0_7, %c0_8] : memref<4x290xf32, #tpu.memory_space<vmem>>, vector<4x256xf32>
    %cst_9 = arith.constant 0.000000e+00 : f32
    %19 = vector.broadcast %cst_9 : f32 to vector<4x256xf32>
    %20 = arith.select %13, %18, %19 : vector<4x256xi1>, vector<4x256xf32>
    %c0_10 = arith.constant 0 : index
    %c1 = arith.constant 1 : index
    %21 = vector.load %arg8[%c0_10, %c1] : memref<4x290xf32, #tpu.memory_space<vmem>>, vector<4x256xf32>
    %c0_11 = arith.constant 0 : index
    %c2 = arith.constant 2 : index
    %22 = vector.load %arg8[%c0_11, %c2] : memref<4x290xf32, #tpu.memory_space<vmem>>, vector<4x256xf32>
    %cst_12 = arith.constant 0.000000e+00 : f32
    %23 = vector.broadcast %cst_12 : f32 to vector<4x256xf32>
    %24 = arith.select %17, %22, %23 : vector<4x256xi1>, vector<4x256xf32>
    %c0_13 = arith.constant 0 : index
    %c16 = arith.constant 16 : index
    %25 = vector.load %arg8[%c0_13, %c16] : memref<4x290xf32, #tpu.memory_space<vmem>>, vector<4x256xf32>
    %cst_14 = arith.constant 0.000000e+00 : f32
    %26 = vector.broadcast %cst_14 : f32 to vector<4x256xf32>
    %27 = arith.select %13, %25, %26 : vector<4x256xi1>, vector<4x256xf32>
    %c0_15 = arith.constant 0 : index
    %c17_16 = arith.constant 17 : index
    %28 = vector.load %arg8[%c0_15, %c17_16] : memref<4x290xf32, #tpu.memory_space<vmem>>, vector<4x256xf32>
    %c0_17 = arith.constant 0 : index
    %c18 = arith.constant 18 : index
    %29 = vector.load %arg8[%c0_17, %c18] : memref<4x290xf32, #tpu.memory_space<vmem>>, vector<4x256xf32>
    %cst_18 = arith.constant 0.000000e+00 : f32
    %30 = vector.broadcast %cst_18 : f32 to vector<4x256xf32>
    %31 = arith.select %17, %29, %30 : vector<4x256xi1>, vector<4x256xf32>
    %c0_19 = arith.constant 0 : index
    %c32 = arith.constant 32 : index
    %32 = vector.load %arg8[%c0_19, %c32] : memref<4x290xf32, #tpu.memory_space<vmem>>, vector<4x256xf32>
    %cst_20 = arith.constant 0.000000e+00 : f32
    %33 = vector.broadcast %cst_20 : f32 to vector<4x256xf32>
    %34 = arith.select %13, %32, %33 : vector<4x256xi1>, vector<4x256xf32>
    %c0_21 = arith.constant 0 : index
    %c33 = arith.constant 33 : index
    %35 = vector.load %arg8[%c0_21, %c33] : memref<4x290xf32, #tpu.memory_space<vmem>>, vector<4x256xf32>
    %c0_22 = arith.constant 0 : index
    %c34 = arith.constant 34 : index
    %36 = vector.load %arg8[%c0_22, %c34] : memref<4x290xf32, #tpu.memory_space<vmem>>, vector<4x256xf32>
    %cst_23 = arith.constant 0.000000e+00 : f32
    %37 = vector.broadcast %cst_23 : f32 to vector<4x256xf32>
    %38 = arith.select %17, %36, %37 : vector<4x256xi1>, vector<4x256xf32>
    %39 = tpu.concatenate %20, %21, %24, %27, %28, %31, %34, %35, %38 in 0 : vector<4x256xf32>, vector<4x256xf32>, vector<4x256xf32>, vector<4x256xf32>, vector<4x256xf32>, vector<4x256xf32>, vector<4x256xf32>, vector<4x256xf32>, vector<4x256xf32> -> vector<36x256xf32>
    %c0_24 = arith.constant 0 : index
    %c0_25 = arith.constant 0 : index
    %40 = vector.load %arg2[%c0_24, %c0_25] : memref<8x36xf32, #tpu.memory_space<vmem>>, vector<8x36xf32>
    %cst_26 = arith.constant dense<0.000000e+00> : vector<8x256xf32>
    %41 = tpu.matmul %40, %39, %cst_26 {dimension_numbers = #tpu.dot_dimension_numbers<[1], [0], [0], [1], [0, 0, 1, 1], [], []>} : vector<8x36xf32>, vector<36x256xf32>, vector<8x256xf32> -> vector<8x256xf32>
    %c0_27 = arith.constant 0 : index
    %c0_28 = arith.constant 0 : index
    %42 = vector.load %arg3[%c0_27, %c0_28] : memref<8x1xf32, #tpu.memory_space<vmem>>, vector<8x1xf32>
    %43 = vector.broadcast %42 : vector<8x1xf32> to vector<8x256xf32>
    %44 = arith.addf %41, %43 : vector<8x256xf32>
    %cst_29 = arith.constant 0.000000e+00 : f32
    %45 = vector.broadcast %cst_29 : f32 to vector<8x256xf32>
    %46 = arith.maximumf %44, %45 : vector<8x256xf32>
    %c255_i32 = arith.constant 255 : i32
    %47 = tpu.dynamic_rotate %46 by %c255_i32 dim 1 : vector<8x256xf32>, i32 -> vector<8x256xf32>
    %c240_i32 = arith.constant 240 : i32
    %48 = tpu.dynamic_rotate %46 by %c240_i32 dim 1 : vector<8x256xf32>, i32 -> vector<8x256xf32>
    %c239_i32 = arith.constant 239 : i32
    %49 = tpu.dynamic_rotate %46 by %c239_i32 dim 1 : vector<8x256xf32>, i32 -> vector<8x256xf32>
    %50 = arith.maximumf %46, %47 : vector<8x256xf32>
    %51 = arith.maximumf %48, %49 : vector<8x256xf32>
    %52 = arith.maximumf %50, %51 : vector<8x256xf32>
    %c0_30 = arith.constant 0 : index
    %c0_31 = arith.constant 0 : index
    %53 = vector.load %arg6[%c0_30, %c0_31] : memref<256x64xf32, #tpu.memory_space<vmem>>, vector<256x64xf32>
    %cst_32 = arith.constant dense<0.000000e+00> : vector<8x64xf32>
    %54 = tpu.matmul %52, %53, %cst_32 {dimension_numbers = #tpu.dot_dimension_numbers<[1], [0], [0], [1], [0, 0, 1, 1], [], []>} : vector<8x256xf32>, vector<256x64xf32>, vector<8x64xf32> -> vector<8x64xf32>
    %cst_33 = arith.constant 0.000000e+00 : f32
    %55 = vector.broadcast %cst_33 : f32 to vector<8x9xf32>
    %c0_34 = arith.constant 0 : index
    %c0_35 = arith.constant 0 : index
    %56 = vector.load %arg9[%c0_34, %c0_35] : memref<8x82xf32, #tpu.memory_space<vmem>>, vector<8x9xf32>
    tpu.vector_store %arg9[%c0_34, %c0_35], %55 {strides = array<i32>} : memref<8x82xf32, #tpu.memory_space<vmem>>, vector<8x9xf32>,
    %cst_36 = arith.constant 0.000000e+00 : f32
    %57 = vector.broadcast %cst_36 : f32 to vector<8x9xf32>
    %c0_37 = arith.constant 0 : index
    %c73 = arith.constant 73 : index
    %58 = vector.load %arg9[%c0_37, %c73] : memref<8x82xf32, #tpu.memory_space<vmem>>, vector<8x9xf32>
    tpu.vector_store %arg9[%c0_37, %c73], %57 {strides = array<i32>} : memref<8x82xf32, #tpu.memory_space<vmem>>, vector<8x9xf32>,
    %c0_38 = arith.constant 0 : index
    %c9 = arith.constant 9 : index
    %59 = vector.load %arg9[%c0_38, %c9] : memref<8x82xf32, #tpu.memory_space<vmem>>, vector<8x64xf32>
    tpu.vector_store %arg9[%c0_38, %c9], %54 {strides = array<i32>} : memref<8x82xf32, #tpu.memory_space<vmem>>, vector<8x64xf32>,
    %60 = tpu.iota {dimensions = array<i32: 1>} : vector<1x64xi32>
    %c7_i32 = arith.constant 7 : i32
    %61 = vector.broadcast %c7_i32 : i32 to vector<1x64xi32>
    %62 = arith.andi %60, %61 : vector<1x64xi32>
    %c1_i32_39 = arith.constant 1 : i32
    %63 = vector.broadcast %c1_i32_39 : i32 to vector<1x64xi32>
    %64 = arith.cmpi sge, %62, %63 : vector<1x64xi32>
    %65 = vector.shape_cast %64 : vector<1x64xi1> to vector<1x64xi1>
    %66 = vector.broadcast %65 : vector<1x64xi1> to vector<8x64xi1>
    %c6_i32 = arith.constant 6 : i32
    %67 = vector.broadcast %c6_i32 : i32 to vector<1x64xi32>
    %68 = arith.cmpi sle, %62, %67 : vector<1x64xi32>
    %69 = vector.shape_cast %68 : vector<1x64xi1> to vector<1x64xi1>
    %70 = vector.broadcast %69 : vector<1x64xi1> to vector<8x64xi1>
    %c0_40 = arith.constant 0 : index
    %c0_41 = arith.constant 0 : index
    %71 = vector.load %arg9[%c0_40, %c0_41] : memref<8x82xf32, #tpu.memory_space<vmem>>, vector<8x64xf32>
    %cst_42 = arith.constant 0.000000e+00 : f32
    %72 = vector.broadcast %cst_42 : f32 to vector<8x64xf32>
    %73 = arith.select %66, %71, %72 : vector<8x64xi1>, vector<8x64xf32>
    %c0_43 = arith.constant 0 : index
    %c1_44 = arith.constant 1 : index
    %74 = vector.load %arg9[%c0_43, %c1_44] : memref<8x82xf32, #tpu.memory_space<vmem>>, vector<8x64xf32>
    %c0_45 = arith.constant 0 : index
    %c2_46 = arith.constant 2 : index
    %75 = vector.load %arg9[%c0_45, %c2_46] : memref<8x82xf32, #tpu.memory_space<vmem>>, vector<8x64xf32>
    %cst_47 = arith.constant 0.000000e+00 : f32
    %76 = vector.broadcast %cst_47 : f32 to vector<8x64xf32>
    %77 = arith.select %70, %75, %76 : vector<8x64xi1>, vector<8x64xf32>
    %c0_48 = arith.constant 0 : index
    %c8 = arith.constant 8 : index
    %78 = vector.load %arg9[%c0_48, %c8] : memref<8x82xf32, #tpu.memory_space<vmem>>, vector<8x64xf32>
    %cst_49 = arith.constant 0.000000e+00 : f32
    %79 = vector.broadcast %cst_49 : f32 to vector<8x64xf32>
    %80 = arith.select %66, %78, %79 : vector<8x64xi1>, vector<8x64xf32>
    %c0_50 = arith.constant 0 : index
    %c9_51 = arith.constant 9 : index
    %81 = vector.load %arg9[%c0_50, %c9_51] : memref<8x82xf32, #tpu.memory_space<vmem>>, vector<8x64xf32>
    %c0_52 = arith.constant 0 : index
    %c10 = arith.constant 10 : index
    %82 = vector.load %arg9[%c0_52, %c10] : memref<8x82xf32, #tpu.memory_space<vmem>>, vector<8x64xf32>
    %cst_53 = arith.constant 0.000000e+00 : f32
    %83 = vector.broadcast %cst_53 : f32 to vector<8x64xf32>
    %84 = arith.select %70, %82, %83 : vector<8x64xi1>, vector<8x64xf32>
    %c0_54 = arith.constant 0 : index
    %c16_55 = arith.constant 16 : index
    %85 = vector.load %arg9[%c0_54, %c16_55] : memref<8x82xf32, #tpu.memory_space<vmem>>, vector<8x64xf32>
    %cst_56 = arith.constant 0.000000e+00 : f32
    %86 = vector.broadcast %cst_56 : f32 to vector<8x64xf32>
    %87 = arith.select %66, %85, %86 : vector<8x64xi1>, vector<8x64xf32>
    %c0_57 = arith.constant 0 : index
    %c17_58 = arith.constant 17 : index
    %88 = vector.load %arg9[%c0_57, %c17_58] : memref<8x82xf32, #tpu.memory_space<vmem>>, vector<8x64xf32>
    %c0_59 = arith.constant 0 : index
    %c18_60 = arith.constant 18 : index
    %89 = vector.load %arg9[%c0_59, %c18_60] : memref<8x82xf32, #tpu.memory_space<vmem>>, vector<8x64xf32>
    %cst_61 = arith.constant 0.000000e+00 : f32
    %90 = vector.broadcast %cst_61 : f32 to vector<8x64xf32>
    %91 = arith.select %70, %89, %90 : vector<8x64xi1>, vector<8x64xf32>
    %92 = tpu.concatenate %73, %74, %77, %80, %81, %84, %87, %88, %91 in 0 : vector<8x64xf32>, vector<8x64xf32>, vector<8x64xf32>, vector<8x64xf32>, vector<8x64xf32>, vector<8x64xf32>, vector<8x64xf32>, vector<8x64xf32>, vector<8x64xf32> -> vector<72x64xf32>
    %c0_62 = arith.constant 0 : index
    %c0_63 = arith.constant 0 : index
    %93 = vector.load %arg4[%c0_62, %c0_63] : memref<16x72xf32, #tpu.memory_space<vmem>>, vector<16x72xf32>
    %cst_64 = arith.constant dense<0.000000e+00> : vector<16x64xf32>
    %94 = tpu.matmul %93, %92, %cst_64 {dimension_numbers = #tpu.dot_dimension_numbers<[1], [0], [0], [1], [0, 0, 1, 1], [], []>} : vector<16x72xf32>, vector<72x64xf32>, vector<16x64xf32> -> vector<16x64xf32>
    %c0_65 = arith.constant 0 : index
    %c0_66 = arith.constant 0 : index
    %95 = vector.load %arg5[%c0_65, %c0_66] : memref<16x1xf32, #tpu.memory_space<vmem>>, vector<16x1xf32>
    %96 = vector.broadcast %95 : vector<16x1xf32> to vector<16x64xf32>
    %97 = arith.addf %94, %96 : vector<16x64xf32>
    %c0_67 = arith.constant 0 : index
    %c0_68 = arith.constant 0 : index
    %c0_69 = arith.constant 0 : index
    %98 = vector.load %arg7[%c0_67, %c0_68, %c0_69] : memref<1x16x64xf32, #tpu.memory_space<vmem>>, vector<1x16x64xf32>
    %99 = vector.shape_cast %98 : vector<1x16x64xf32> to vector<16x64xf32>
    %100 = vector.shape_cast %97 : vector<16x64xf32> to vector<1x16x64xf32>
    tpu.vector_store %arg7[%c0_67, %c0_68, %c0_69], %100 {strides = array<i32>} : memref<1x16x64xf32, #tpu.memory_space<vmem>>, vector<1x16x64xf32>,
    return
  }
  func.func @transform_0(%arg0: i32) -> (i32, i32, i32) {
    %c0_i32 = arith.constant 0 : i32
    %c0_i32_0 = arith.constant 0 : i32
    %c0_i32_1 = arith.constant 0 : i32
    return %arg0, %c0_i32, %c0_i32_0 : i32, i32, i32
  }
  func.func @transform_1(%arg0: i32) -> (i32, i32) {
    %c0_i32 = arith.constant 0 : i32
    %c0_i32_0 = arith.constant 0 : i32
    %c0_i32_1 = arith.constant 0 : i32
    return %c0_i32, %c0_i32_0 : i32, i32
  }
  func.func @transform_2(%arg0: i32) -> (i32, i32) {
    %c0_i32 = arith.constant 0 : i32
    %c0_i32_0 = arith.constant 0 : i32
    %c0_i32_1 = arith.constant 0 : i32
    return %c0_i32, %c0_i32_0 : i32, i32
  }
  func.func @transform_3(%arg0: i32) -> (i32, i32) {
    %c0_i32 = arith.constant 0 : i32
    %c0_i32_0 = arith.constant 0 : i32
    %c0_i32_1 = arith.constant 0 : i32
    return %c0_i32, %c0_i32_0 : i32, i32
  }
  func.func @transform_4(%arg0: i32) -> (i32, i32) {
    %c0_i32 = arith.constant 0 : i32
    %c0_i32_0 = arith.constant 0 : i32
    %c0_i32_1 = arith.constant 0 : i32
    return %c0_i32, %c0_i32_0 : i32, i32
  }
  func.func @transform_5(%arg0: i32) -> (i32, i32) {
    %c0_i32 = arith.constant 0 : i32
    %c0_i32_0 = arith.constant 0 : i32
    %c0_i32_1 = arith.constant 0 : i32
    return %c0_i32, %c0_i32_0 : i32, i32
  }
  func.func @transform_6(%arg0: i32) -> (i32, i32, i32) {
    %c0_i32 = arith.constant 0 : i32
    %c0_i32_0 = arith.constant 0 : i32
    %c0_i32_1 = arith.constant 0 : i32
    return %arg0, %c0_i32, %c0_i32_0 : i32, i32, i32
  }
}

</mosaic_0001>

<llo_original>
// kernel: feedback48_features.1
$region0: #{feedback48_features.1}
  #allocation0 [shape = 'u32[]', space=smem, size = 0x4, offset = 0x4, fixed_abs, tag = 'smem constant byte address 0x4 - core index']
  #allocation1 [shape = 'u32[144,128]{1,0:T(1,128)}', space=vmem, size = 0x12000, scoped, tag = 'internal scratch']
  #allocation2 [shape = 'f32[4,290]{1,0:T(4,128)}', space=vmem, size = 0x1800, scoped, tag = 'scratch operand']
  #allocation3 [shape = 'f32[8,82]{1,0:T(8,128)}', space=vmem, size = 0x1000, scoped, tag = 'scratch operand']
  %s0 = inlined_call_operand.vmem [shape: f32[2,4,256], index: 0, kind: input, shape index: {}]
  %s1 = inlined_call_operand.vmem [shape: f32[8,36], index: 1, kind: input, shape index: {}]
  %s2 = inlined_call_operand.vmem [shape: f32[8,1], index: 2, kind: input, shape index: {}]
  %s3 = inlined_call_operand.vmem [shape: f32[16,72], index: 3, kind: input, shape index: {}]
  %s4 = inlined_call_operand.vmem [shape: f32[16,1], index: 4, kind: input, shape index: {}]
  %s5 = inlined_call_operand.vmem [shape: f32[256,64], index: 5, kind: input, shape index: {}]
  %s6 = inlined_call_operand.vmem [shape: f32[2,16,64], index: 6, kind: output, shape index: {}]
  %s7 = sld [smem:[#allocation0]]
  $region57: #{feedback48_features.1} parent=0
    _
  %s9 = ssub.s32 1, %s7
  %s10 = scalar_select 0, %s9, %s7
  loop: start=0, step=1, limit=4
  $region2: #{feedback48_features.1} parent=0 // loop_pre_header
    _
  $region3: #{feedback48_features.1} parent=0 // loop_header
    %s12 = sphi 0, %s16
    %p13 = scmp.ge.s32.totalorder %s12, 4
    %s22 = sphi 0, %s24
    %s25 = sphi 0, %s22
    %s26 = sphi 0, %s25
    %s42 = sphi 0, %s26
    %s46 = sphi 0, %s46
    %s48 = sphi 0, %s46
    %s49 = sphi 0, %s48
    %s63 = sphi 0, %s49
    %s67 = sphi 0, %s67
    %s69 = sphi 0, %s67
    %s70 = sphi 0, %s69
    %s84 = sphi 0, %s70
    %s88 = sphi 0, %s88
    %s90 = sphi 0, %s88
    %s91 = sphi 0, %s90
    %s105 = sphi 0, %s91
    %s109 = sphi 0, %s109
    %s111 = sphi 0, %s109
    %s112 = sphi 0, %s111
    %s126 = sphi 0, %s112
    %s130 = sphi 0, %s130
    %s132 = sphi 0, %s130
    %s133 = sphi 0, %s132
    %s147 = sphi 0, %s133
    %s153 = sphi 0, %s155
    %s156 = sphi 0, %s153
    %s157 = sphi 0, %s156
    %s173 = sphi 0, %s157
  $region4: #{feedback48_features.1} parent=0 // loop_header_branch
    %15 = sbr.rel (%p13) target = $region8
  $region5: #{feedback48_features.1} parent=0 // loop_body
    %s17 = ssub.s32 %s12, 1
    %s18 = ssub.s32 %s12, 2
    %s19 = sadd.s32 %s12, 1
    %s20 = ssub.s32 %s12, %s19
    %p21 = scmp.eq.s32.totalorder %s20, 0
    %s23 = sadd.s32 %s22, 1
    %s24 = scalar_select %p21, %s22, %s23
    %p27 = pneg %p21
    %p28 = scmp.eq.s32.totalorder %s12, 1
    %p29 = por %p27, %p28
    %p30 = scmp.ne.s32.totalorder %s22, %s25
    %p31 = scmp.eq.s32.totalorder %s12, 0
    %p32 = por %p30, %p31
    %p33 = scmp.ne.s32.totalorder %s22, %s25
    %p34 = scmp.eq.s32.totalorder %s17, 1
    %p35 = por %p33, %p34
    %p36 = scmp.ne.s32.totalorder %s25, %s26
    %p37 = scmp.eq.s32.totalorder %s17, 0
    %p38 = por %p36, %p37
    %p39 = scmp.ne.s32.totalorder %s25, %s26
    %p40 = scmp.eq.s32.totalorder %s18, 1
    %p41 = por %p39, %p40
    %p43 = scmp.ne.s32.totalorder %s26, %s42
    %p44 = scmp.eq.s32.totalorder %s18, 0
    %p45 = por %p43, %p44
    %s47 = sadd.s32 %s46, 1
    %p50 = scmp.eq.s32.totalorder %s12, 1
    %p51 = scmp.ne.s32.totalorder %s46, %s48
    %p52 = scmp.eq.s32.totalorder %s12, 0
    %p53 = por %p51, %p52
    %p54 = scmp.ne.s32.totalorder %s46, %s48
    %p55 = scmp.eq.s32.totalorder %s17, 1
    %p56 = por %p54, %p55
    %p57 = scmp.ne.s32.totalorder %s48, %s49
    %p58 = scmp.eq.s32.totalorder %s17, 0
    %p59 = por %p57, %p58
    %p60 = scmp.ne.s32.totalorder %s48, %s49
    %p61 = scmp.eq.s32.totalorder %s18, 1
    %p62 = por %p60, %p61
    %p64 = scmp.ne.s32.totalorder %s49, %s63
    %p65 = scmp.eq.s32.totalorder %s18, 0
    %p66 = por %p64, %p65
    %s68 = sadd.s32 %s67, 1
    %p71 = scmp.eq.s32.totalorder %s12, 1
    %p72 = scmp.ne.s32.totalorder %s67, %s69
    %p73 = scmp.eq.s32.totalorder %s12, 0
    %p74 = por %p72, %p73
    %p75 = scmp.ne.s32.totalorder %s67, %s69
    %p76 = scmp.eq.s32.totalorder %s17, 1
    %p77 = por %p75, %p76
    %p78 = scmp.ne.s32.totalorder %s69, %s70
    %p79 = scmp.eq.s32.totalorder %s17, 0
    %p80 = por %p78, %p79
    %p81 = scmp.ne.s32.totalorder %s69, %s70
    %p82 = scmp.eq.s32.totalorder %s18, 1
    %p83 = por %p81, %p82
    %p85 = scmp.ne.s32.totalorder %s70, %s84
    %p86 = scmp.eq.s32.totalorder %s18, 0
    %p87 = por %p85, %p86
    %s89 = sadd.s32 %s88, 1
    %p92 = scmp.eq.s32.totalorder %s12, 1
    %p93 = scmp.ne.s32.totalorder %s88, %s90
    %p94 = scmp.eq.s32.totalorder %s12, 0
    %p95 = por %p93, %p94
    %p96 = scmp.ne.s32.totalorder %s88, %s90
    %p97 = scmp.eq.s32.totalorder %s17, 1
    %p98 = por %p96, %p97
    %p99 = scmp.ne.s32.totalorder %s90, %s91
    %p100 = scmp.eq.s32.totalorder %s17, 0
    %p101 = por %p99, %p100
    %p102 = scmp.ne.s32.totalorder %s90, %s91
    %p103 = scmp.eq.s32.totalorder %s18, 1
    %p104 = por %p102, %p103
    %p106 = scmp.ne.s32.totalorder %s91, %s105
    %p107 = scmp.eq.s32.totalorder %s18, 0
    %p108 = por %p106, %p107
    %s110 = sadd.s32 %s109, 1
    %p113 = scmp.eq.s32.totalorder %s12, 1
    %p114 = scmp.ne.s32.totalorder %s109, %s111
    %p115 = scmp.eq.s32.totalorder %s12, 0
    %p116 = por %p114, %p115
    %p117 = scmp.ne.s32.totalorder %s109, %s111
    %p118 = scmp.eq.s32.totalorder %s17, 1
    %p119 = por %p117, %p118
    %p120 = scmp.ne.s32.totalorder %s111, %s112
    %p121 = scmp.eq.s32.totalorder %s17, 0
    %p122 = por %p120, %p121
    %p123 = scmp.ne.s32.totalorder %s111, %s112
    %p124 = scmp.eq.s32.totalorder %s18, 1
    %p125 = por %p123, %p124
    %p127 = scmp.ne.s32.totalorder %s112, %s126
    %p128 = scmp.eq.s32.totalorder %s18, 0
    %p129 = por %p127, %p128
    %s131 = sadd.s32 %s130, 1
    %p134 = scmp.eq.s32.totalorder %s12, 1
    %p135 = scmp.ne.s32.totalorder %s130, %s132
    %p136 = scmp.eq.s32.totalorder %s12, 0
    %p137 = por %p135, %p136
    %p138 = scmp.ne.s32.totalorder %s130, %s132
    %p139 = scmp.eq.s32.totalorder %s17, 1
    %p140 = por %p138, %p139
    %p141 = scmp.ne.s32.totalorder %s132, %s133
    %p142 = scmp.eq.s32.totalorder %s17, 0
    %p143 = por %p141, %p142
    %p144 = scmp.ne.s32.totalorder %s132, %s133
    %p145 = scmp.eq.s32.totalorder %s18, 1
    %p146 = por %p144, %p145
    %p148 = scmp.ne.s32.totalorder %s133, %s147
    %p149 = scmp.eq.s32.totalorder %s18, 0
    %p150 = por %p148, %p149
    %s151 = ssub.s32 %s12, %s19
    %p152 = scmp.eq.s32.totalorder %s151, 0
    %s154 = sadd.s32 %s153, 1
    %s155 = scalar_select %p152, %s153, %s154
    %p158 = pneg %p152
    %p159 = scmp.eq.s32.totalorder %s12, 1
    %p160 = por %p158, %p159
    %p161 = scmp.ne.s32.totalorder %s153, %s156
    %p162 = scmp.eq.s32.totalorder %s12, 0
    %p163 = por %p161, %p162
    %p164 = scmp.ne.s32.totalorder %s153, %s156
    %p165 = scmp.eq.s32.totalorder %s17, 1
    %p166 = por %p164, %p165
    %p167 = scmp.ne.s32.totalorder %s156, %s157
    %p168 = scmp.eq.s32.totalorder %s17, 0
    %p169 = por %p167, %p168
    %p170 = scmp.ne.s32.totalorder %s156, %s157
    %p171 = scmp.eq.s32.totalorder %s18, 1
    %p172 = por %p170, %p171
    %p174 = scmp.ne.s32.totalorder %s157, %s173
    %p175 = scmp.eq.s32.totalorder %s18, 0
    %p176 = por %p174, %p175
    %p177 = scmp.le.s32.totalorder 1, %s12
    %p178 = scmp.lt.s32.totalorder %s12, 3
    %p179 = pnand %p177, %p178
    %p180 = pneg %p179
    // Predicated region
    $region9: #{feedback48_features.1} parent=5 // pred_check
      _
    $region10: #{feedback48_features.1} parent=5 // pred_check_branch
      %182 = sbr.rel (%p179) target = $region12
    $region11: #{feedback48_features.1} parent=5 // pred_region
      %s183 = ssub.s32 %s12, 1
      // Predicated region
      $region13: #{feedback48_features.1} parent=11 // pred_check
        %p184 = pneg %p59
      $region14: #{feedback48_features.1} parent=11 // pred_check_branch
        %186 = sbr.rel (%p184) target = $region16
      $region15: #{feedback48_features.1} parent=11 // pred_region
        _
      $region16: #{feedback48_features.1} parent=11 // pred_fallthru
        _
      // Predicated region
      $region17: #{feedback48_features.1} parent=11 // pred_check
        %p187 = pneg %p80
      $region18: #{feedback48_features.1} parent=11 // pred_check_branch
        %189 = sbr.rel (%p187) target = $region20
      $region19: #{feedback48_features.1} parent=11 // pred_region
        _
      $region20: #{feedback48_features.1} parent=11 // pred_fallthru
        _
      // Predicated region
      $region21: #{feedback48_features.1} parent=11 // pred_check
        %p190 = pneg %p101
      $region22: #{feedback48_features.1} parent=11 // pred_check_branch
        %192 = sbr.rel (%p190) target = $region24
      $region23: #{feedback48_features.1} parent=11 // pred_region
        _
      $region24: #{feedback48_features.1} parent=11 // pred_fallthru
        _
      // Predicated region
      $region25: #{feedback48_features.1} parent=11 // pred_check
        %p193 = pneg %p122
      $region26: #{feedback48_features.1} parent=11 // pred_check_branch
        %195 = sbr.rel (%p193) target = $region28
      $region27: #{feedback48_features.1} parent=11 // pred_region
        _
      $region28: #{feedback48_features.1} parent=11 // pred_fallthru
        _
      // Predicated region
      $region29: #{feedback48_features.1} parent=11 // pred_check
        %p196 = pneg %p143
      $region30: #{feedback48_features.1} parent=11 // pred_check_branch
        %198 = sbr.rel (%p196) target = $region32
      $region31: #{feedback48_features.1} parent=11 // pred_region
        _
      $region32: #{feedback48_features.1} parent=11 // pred_fallthru
        _
    $region12: #{feedback48_features.1} parent=5 // pred_fallthru
      _
    %p199 = scmp.lt.s32.totalorder %s12, 2
    // Predicated region
    $region33: #{feedback48_features.1} parent=5 // pred_check
      %p200 = pneg %p199
    $region34: #{feedback48_features.1} parent=5 // pred_check_branch
      %202 = sbr.rel (%p200) target = $region36
    $region35: #{feedback48_features.1} parent=5 // pred_region
      // Predicated region
      $region37: #{feedback48_features.1} parent=35 // pred_check
        %p203 = pneg %p32
      $region38: #{feedback48_features.1} parent=35 // pred_check_branch
        %205 = sbr.rel (%p203) target = $region40
      $region39: #{feedback48_features.1} parent=35 // pred_region
        %p206 = scmp.lt.s32.totalorder %s12, 1
        %s207 = scalar_select %p206, %s12, 1
        %s208 = smul.addr %s207, 2
        %s209 = smul.addr %s208, 4
        %s210 = scalar_lea.vmem %s0, %s209
      $region40: #{feedback48_features.1} parent=35 // pred_fallthru
        _
    $region36: #{feedback48_features.1} parent=5 // pred_fallthru
      _
    %p211 = scmp.le.s32.totalorder 1, %s12
    %p212 = scmp.lt.s32.totalorder %s12, 3
    %p213 = pnand %p211, %p212
    %p214 = pneg %p213
    // Predicated region
    $region41: #{feedback48_features.1} parent=5 // pred_check
      _
    $region42: #{feedback48_features.1} parent=5 // pred_check_branch
      %216 = sbr.rel (%p213) target = $region44
    $region43: #{feedback48_features.1} parent=5 // pred_region
      %s217 = ssub.s32 %s12, 1
      %p218 = scmp.lt.s32.totalorder %s17, 1
      %s219 = scalar_select %p218, %s17, 1
      %s220 = smul.addr %s219, 2
      %s221 = smul.addr %s220, 4
      %s222 = scalar_lea.vmem %s0, %s221
      %p223 = pneg %p38
      %p224 = pneg %p35
      %p225 = pneg %p59
      %p226 = pneg %p56
      %p227 = pneg %p80
      %p228 = pneg %p77
      %p229 = pneg %p101
      %p230 = pneg %p98
      %p231 = pneg %p122
      %p232 = pneg %p119
      %p233 = pneg %p143
      %p234 = pneg %p140
      %p235 = pneg %p169
      %p236 = pneg %p166
      %p237 = scmp.lt.s32.totalorder %s17, 1
      %s238 = scalar_select %p237, %s17, 1
      %s239 = smul.addr %s238, 2
      %s240 = smul.addr %s239, 8
      %s241 = scalar_lea.vmem %s6, %s240
      %p242 = scmp.lt.s32.totalorder %s17, 1
      %s243 = scalar_select %p242, %s17, 1
      %s244 = smul.addr %s243, 2
      %s245 = smul.addr %s244, 4
      %s246 = scalar_lea.vmem %s0, %s245
      %p247 = scmp.lt.s32.totalorder %s17, 1
      %s248 = scalar_select %p247, %s17, 1
      %s249 = smul.addr %s248, 2
      %s250 = smul.addr %s249, 8
      %s251 = scalar_lea.vmem %s6, %s250
      %vm252 = vcmask 134144
      %253 = vst.msk [vmem:[#allocation2] sm:$0xf] %vm252, 0.0
      %vm254 = vcmask 273544
      %255 = vst.msk [vmem:[#allocation2 + $0x8] sm:$0xf] %vm254, 0.0
      %v256 = vld [vmem:[%s246] sm:$0xff]
      %258 = vrot.lane.b32.xlu0 %v256, 17
      %v259 = vpop.permute.xlu0 %258
      %v260 = vrot.slane %v259, 4
      %vm261 = vcmask 138240
      %v262 = vsel %vm261, %v260, %v259
      %vm265 = vcmask 1043592
      %vm266 = vcmask 1047556
      %vm267 = vmor %vm266, %vm265
      %268 = vst.msk [vmem:[#allocation2] sm:$0xff] %vm267, %v262
      %269 = vst.msk [vmem:[#allocation2 + $0x8] sm:$0xf] %vm252, %v260
      %v270 = vlaneseq
      %v271 = vand.u32 %v270, 127
      %v272 = vadd.s32 %v271, 128
      %v273 = vand.u32 %v271, 15
      %v274 = vand.u32 %v272, 15
      %vm275 = vcmp.ge.s32.totalorder %v273, 1
      %vm276 = vcmp.ge.s32.totalorder %v274, 1
      %v277 = vsel %vm275, 1, 0
      %v278 = vsel %vm276, 1, 0
      %vm279 = vcmp.eq.s32.totalorder %v277, 1
      %vm280 = vcmp.eq.s32.totalorder %v278, 1
      %vm281 = vcmp.le.s32.totalorder %v273, 14
      %vm282 = vcmp.le.s32.totalorder %v274, 14
      %v283 = vsel %vm281, 1, 0
      %v284 = vsel %vm282, 1, 0
      %vm285 = vcmp.eq.s32.totalorder %v283, 1
      %vm286 = vcmp.eq.s32.totalorder %v284, 1
      %v287 = vld [vmem:[#allocation2] sm:$0xff]
      %v289 = vcombine.high %v287, %v287
      %v291 = vsel %vm279, %v287, 0.0
      %v292 = vsel %vm280, %v289, 0.0
      %v293 = vld [vmem:[#allocation2 + $0x8] sm:$0xf]
      %295 = vrot.lane.b32.xlu0 %v287, 126
      %v296 = vpop.permute.xlu0 %295
      %297 = vrot.lane.b32.xlu0 %v289, 126
      %v298 = vpop.permute.xlu0 %297
      %299 = vrot.lane.b32.xlu0 %v293, 126
      %v300 = vpop.permute.xlu0 %299
      %vm301 = vcmask 1031168
      %v302 = vsel %vm301, %v296, %v298
      %v303 = vsel %vm301, %v298, %v300
      %v306 = vsel %vm285, %v302, 0.0
      %v307 = vsel %vm286, %v303, 0.0
      %308 = vrot.lane.b32.xlu0 %v287, 112
      %v309 = vpop.permute.xlu0 %308
      %310 = vrot.lane.b32.xlu0 %v289, 112
      %v311 = vpop.permute.xlu0 %310
      %312 = vrot.lane.b32.xlu0 %v293, 112
      %v313 = vpop.permute.xlu0 %312
      %vm314 = vcmask 916480
      %v315 = vsel %vm314, %v309, %v311
      %v316 = vsel %vm314, %v311, %v313
      %v319 = vsel %vm279, %v315, 0.0
      %v320 = vsel %vm280, %v316, 0.0
      %321 = vrot.lane.b32.xlu0 %v287, 110
      %v322 = vpop.permute.xlu0 %321
      %323 = vrot.lane.b32.xlu0 %v289, 110
      %v324 = vpop.permute.xlu0 %323
      %325 = vrot.lane.b32.xlu0 %v293, 110
      %v326 = vpop.permute.xlu0 %325
      %vm327 = vcmask 900096
      %v328 = vsel %vm327, %v322, %v324
      %v329 = vsel %vm327, %v324, %v326
      %v332 = vsel %vm285, %v328, 0.0
      %v333 = vsel %vm286, %v329, 0.0
      %334 = vrot.lane.b32.xlu0 %v287, 96
      %v335 = vpop.permute.xlu0 %334
      %336 = vrot.lane.b32.xlu0 %v289, 96
      %v337 = vpop.permute.xlu0 %336
      %338 = vrot.lane.b32.xlu0 %v293, 96
      %v339 = vpop.permute.xlu0 %338
      %vm340 = vcmask 785408
      %v341 = vsel %vm340, %v335, %v337
      %v342 = vsel %vm340, %v337, %v339
      %v345 = vsel %vm279, %v341, 0.0
      %v346 = vsel %vm280, %v342, 0.0
      %347 = vrot.lane.b32.xlu0 %v287, 94
      %v348 = vpop.permute.xlu0 %347
      %349 = vrot.lane.b32.xlu0 %v289, 94
      %v350 = vpop.permute.xlu0 %349
      %351 = vrot.lane.b32.xlu0 %v293, 94
      %v352 = vpop.permute.xlu0 %351
      %vm353 = vcmask 769024
      %v354 = vsel %vm353, %v348, %v350
      %v355 = vsel %vm353, %v350, %v352
      %v358 = vsel %vm285, %v354, 0.0
      %v359 = vsel %vm286, %v355, 0.0
      %v360 = vcombine.low %v287, %v287
      %v361 = vcombine.low %v293, %v293
      %362 = vrot.lane.b32.xlu0 %v360, 127
      %v363 = vpop.permute.xlu0 %362
      %364 = vrot.lane.b32.xlu0 %v287, 127
      %v365 = vpop.permute.xlu0 %364
      %366 = vrot.lane.b32.xlu0 %v361, 127
      %v367 = vpop.permute.xlu0 %366
      %vm368 = vcmask 1039360
      %v369 = vsel %vm368, %v363, %v365
      %v370 = vsel %vm368, %v365, %v367
      %v375 = vrot.slane %v319, 4
      %v376 = vrot.slane %v320, 4
      %379 = vrot.lane.b32.xlu0 %v287, 111
      %v380 = vpop.permute.xlu0 %379
      %381 = vrot.lane.b32.xlu0 %v289, 111
      %v382 = vpop.permute.xlu0 %381
      %383 = vrot.lane.b32.xlu0 %v293, 111
      %v384 = vpop.permute.xlu0 %383
      %vm385 = vcmask 908288
      %v386 = vsel %vm385, %v380, %v382
      %v387 = vsel %vm385, %v382, %v384
      %v392 = vrot.slane %v332, 4
      %v393 = vrot.slane %v333, 4
      %396 = vrot.lane.b32.xlu0 %v360, 95
      %v397 = vpop.permute.xlu0 %396
      %398 = vrot.lane.b32.xlu0 %v287, 95
      %v399 = vpop.permute.xlu0 %398
      %400 = vrot.lane.b32.xlu0 %v361, 95
      %v401 = vpop.permute.xlu0 %400
      %vm402 = vcmask 777216
      %v403 = vsel %vm402, %v397, %v399
      %v404 = vsel %vm402, %v399, %v401
      %vm407 = vcmask 1043456
      %v408 = vsel %vm407, %v291, %v369
      %v409 = vsel %vm407, %v292, %v370
      %v410 = vsel %vm407, %v306, %v375
      %v411 = vsel %vm407, %v307, %v376
      %v412 = vsel %vm407, %v386, %v392
      %v413 = vsel %vm407, %v387, %v393
      %v414 = vsel %vm407, %v345, %v403
      %v415 = vsel %vm407, %v346, %v404
      %v416 = vld [vmem:[%s1] sm:$0xff]
      %v417 = vld [vmem:[%s2] sm:$0xff]
      %419 = vset.pattern.permute.xlu0 0
      %420 = vperm.xlu0 %419, %v417
      %v421 = vpop.permute.xlu0 %420
      %vm423 = vcmask 293888
      %v425 = vsel %vm423, %v416, 0
      %v428 = vsel %vm407, %v358, 0
      %v431 = vsel %vm407, %v359, 0
      %433 = vmatprep.subr.mxu0 %v409
      %434 = vmatpush1.msra.mxu0 %v408
      %435 = vmatprep.subr.mxu0 %v411
      %436 = vmatpush1.msra.mxu0 %v410
      %437 = vmatprep.subr.mxu0 %v413
      %438 = vmatpush1.msra.mxu0 %v412
      %439 = vmatprep.subr.mxu0 %v415
      %440 = vmatpush1.msra.mxu0 %v414
      %441 = vmatprep.subr.mxu0 %v431
      %442 = vmatpush1.msra.mxu0 %v428
      %443 = vmatprep.subr.mxu0 0.0
      %444 = vmatpush1.msra.mxu0 0.0
      %445 = vmatprep.subr.mxu0 0.0
      %446 = vmatpush1.msra.mxu0 0.0
      %447 = vmatprep.subr.mxu0 0.0
      %448 = vmatpush1.msra.mxu0 0.0
      %449 = vmatprep.subr.mxu0 0.0
      %450 = vmatpush1.msra.mxu0 0.0
      %451 = vmatprep.subr.mxu0 0.0
      %452 = vmatpush1.msra.mxu0 0.0
      %453 = vmatprep.subr.mxu0 0.0
      %454 = vmatpush1.msra.mxu0 0.0
      %455 = vmatprep.subr.mxu0 0.0
      %456 = vmatpush1.msra.mxu0 0.0
      %457 = vmatprep.subr.mxu0 0.0
      %458 = vmatpush1.msra.mxu0 0.0
      %459 = vmatprep.subr.mxu0 0.0
      %460 = vmatpush1.msra.mxu0 0.0
      %461 = vmatprep.subr.mxu0 0.0
      %462 = vmatpush1.msra.mxu0 0.0
      %463 = vmatprep.subr.mxu0 0.0
      %464 = vmatpush1.msra.mxu0 0.0
      %465 = vmatprep.subr.mxu0 0.0
      %466 = vmatpush1.msra.mxu0 0.0
      %467 = vmatprep.subr.mxu0 0.0
      %468 = vmatpush1.msra.mxu0 0.0
      %469 = vmatprep.subr.mxu0 0.0
      %470 = vmatpush1.msra.mxu0 0.0
      %471 = vmatprep.subr.mxu0 0.0
      %472 = vmatpush1.msra.mxu0 0.0
      %473 = vmatprep.subr.mxu0 0.0
      %474 = vmatpush1.msra.mxu0 0.0
      %475 = vmatprep.subr.mxu0 0.0
      %476 = vmatpush1.msra.mxu0 0.0
      %477 = vmatprep.subr.mxu0 0.0
      %478 = vmatpush1.msra.mxu0 0.0
      %479 = vmatprep.subr.mxu0 0.0
      %480 = vmatpush1.msra.mxu0 0.0
      %481 = vmatprep.subr.mxu0 0.0
      %482 = vmatpush1.msra.mxu0 0.0
      %483 = vmatprep.subr.mxu0 0.0
      %484 = vmatpush1.msra.mxu0 0.0
      %485 = vmatprep.subr.mxu0 0.0
      %486 = vmatpush1.msra.mxu0 0.0
      %487 = vmatprep.subr.mxu0 0.0
      %488 = vmatpush1.msra.mxu0 0.0
      %489 = vmatprep.subr.mxu0 0.0
      %490 = vmatpush1.msra.mxu0 0.0
      %491 = vmatprep.subr.mxu0 0.0
      %492 = vmatpush1.msra.mxu0 0.0
      %493 = vmatprep.subr.mxu0 0.0
      %494 = vmatpush1.msra.mxu0 0.0
      %495 = vmatprep.subr.mxu0 0.0
      %496 = vmatpush1.msra.mxu0 0.0
      %497 = vmatprep.mubr.f32.mxu0 0.0
      %498 = vmatmul.mubr.f32.gmra.mrb[0].mxu0 %v425
      %v499 = vpop.f32.mrb[0].mxu0
      %v500 = vadd.f32 %v421, %v499
      %v501 = vpop.f32.mrb[0].mxu0
      %v502 = vadd.f32 %v421, %v501
      %503 = vdwg.mxu0
      %v504 = vmax.f32 %v500, 0.0
      %v505 = vmax.f32 %v502, 0.0
      %506 = vrot.lane.b32.xlu0 %v504, 127
      %v507 = vpop.permute.xlu0 %506
      %508 = vrot.lane.b32.xlu0 %v505, 127
      %v509 = vpop.permute.xlu0 %508
      %vm510 = vcmp.lt.s32.totalorder %v271, 127
      %v511 = vsel %vm510, %v507, %v509
      %v512 = vsel %vm510, %v509, %v507
      %513 = vrot.lane.b32.xlu0 %v504, 112
      %v514 = vpop.permute.xlu0 %513
      %515 = vrot.lane.b32.xlu0 %v505, 112
      %v516 = vpop.permute.xlu0 %515
      %vm517 = vcmp.lt.s32.totalorder %v271, 112
      %v518 = vsel %vm517, %v514, %v516
      %v519 = vsel %vm517, %v516, %v514
      %520 = vrot.lane.b32.xlu0 %v504, 111
      %v521 = vpop.permute.xlu0 %520
      %522 = vrot.lane.b32.xlu0 %v505, 111
      %v523 = vpop.permute.xlu0 %522
      %vm524 = vcmp.lt.s32.totalorder %v271, 111
      %v525 = vsel %vm524, %v521, %v523
      %v526 = vsel %vm524, %v523, %v521
      %v527 = vmax.f32 %v504, %v511
      %v528 = vmax.f32 %v505, %v512
      %v529 = vmax.f32 %v518, %v525
      %v530 = vmax.f32 %v519, %v526
      %v531 = vmax.f32 %v527, %v529
      %v532 = vmax.f32 %v528, %v530
      %v533 = vld [vmem:[%s5] sm:$0xff]
      %v534 = vld [vmem:[%s5 + $0x8] sm:$0xff]
      %v535 = vld [vmem:[%s5 + $0x10] sm:$0xff]
      %v536 = vld [vmem:[%s5 + $0x18] sm:$0xff]
      %v537 = vld [vmem:[%s5 + $0x20] sm:$0xff]
      %v538 = vld [vmem:[%s5 + $0x28] sm:$0xff]
      %v539 = vld [vmem:[%s5 + $0x30] sm:$0xff]
      %v540 = vld [vmem:[%s5 + $0x38] sm:$0xff]
      %v541 = vld [vmem:[%s5 + $0x40] sm:$0xff]
      %v542 = vld [vmem:[%s5 + $0x48] sm:$0xff]
      %v543 = vld [vmem:[%s5 + $0x50] sm:$0xff]
      %v544 = vld [vmem:[%s5 + $0x58] sm:$0xff]
      %v545 = vld [vmem:[%s5 + $0x60] sm:$0xff]
      %v546 = vld [vmem:[%s5 + $0x68] sm:$0xff]
      %v547 = vld [vmem:[%s5 + $0x70] sm:$0xff]
      %v548 = vld [vmem:[%s5 + $0x78] sm:$0xff]
      %v549 = vld [vmem:[%s5 + $0x80] sm:$0xff]
      %v550 = vld [vmem:[%s5 + $0x88] sm:$0xff]
      %v551 = vld [vmem:[%s5 + $0x90] sm:$0xff]
      %v552 = vld [vmem:[%s5 + $0x98] sm:$0xff]
      %v553 = vld [vmem:[%s5 + $0xa0] sm:$0xff]
      %v554 = vld [vmem:[%s5 + $0xa8] sm:$0xff]
      %v555 = vld [vmem:[%s5 + $0xb0] sm:$0xff]
      %v556 = vld [vmem:[%s5 + $0xb8] sm:$0xff]
      %v557 = vld [vmem:[%s5 + $0xc0] sm:$0xff]
      %v558 = vld [vmem:[%s5 + $0xc8] sm:$0xff]
      %v559 = vld [vmem:[%s5 + $0xd0] sm:$0xff]
      %v560 = vld [vmem:[%s5 + $0xd8] sm:$0xff]
      %v561 = vld [vmem:[%s5 + $0xe0] sm:$0xff]
      %v562 = vld [vmem:[%s5 + $0xe8] sm:$0xff]
      %v563 = vld [vmem:[%s5 + $0xf0] sm:$0xff]
      %v564 = vld [vmem:[%s5 + $0xf8] sm:$0xff]
      %565 = vmatprep.subr.mxu0 0.0
      %566 = vmatpush1.msra.mxu0 %v533
      %567 = vmatprep.subr.mxu0 0.0
      %568 = vmatpush1.msra.mxu0 %v534
      %569 = vmatprep.subr.mxu0 0.0
      %570 = vmatpush1.msra.mxu0 %v535
      %571 = vmatprep.subr.mxu0 0.0
      %572 = vmatpush1.msra.mxu0 %v536
      %573 = vmatprep.subr.mxu0 0.0
      %574 = vmatpush1.msra.mxu0 %v537
      %575 = vmatprep.subr.mxu0 0.0
      %576 = vmatpush1.msra.mxu0 %v538
      %577 = vmatprep.subr.mxu0 0.0
      %578 = vmatpush1.msra.mxu0 %v539
      %579 = vmatprep.subr.mxu0 0.0
      %580 = vmatpush1.msra.mxu0 %v540
      %581 = vmatprep.subr.mxu0 0.0
      %582 = vmatpush1.msra.mxu0 %v541
      %583 = vmatprep.subr.mxu0 0.0
      %584 = vmatpush1.msra.mxu0 %v542
      %585 = vmatprep.subr.mxu0 0.0
      %586 = vmatpush1.msra.mxu0 %v543
      %587 = vmatprep.subr.mxu0 0.0
      %588 = vmatpush1.msra.mxu0 %v544
      %589 = vmatprep.subr.mxu0 0.0
      %590 = vmatpush1.msra.mxu0 %v545
      %591 = vmatprep.subr.mxu0 0.0
      %592 = vmatpush1.msra.mxu0 %v546
      %593 = vmatprep.subr.mxu0 0.0
      %594 = vmatpush1.msra.mxu0 %v547
      %595 = vmatprep.subr.mxu0 0.0
      %596 = vmatpush1.msra.mxu0 %v548
      %597 = vmatprep.subr.mxu0 0.0
      %598 = vmatpush1.msra.mxu0 %v549
      %599 = vmatprep.subr.mxu0 0.0
      %600 = vmatpush1.msra.mxu0 %v550
      %601 = vmatprep.subr.mxu0 0.0
      %602 = vmatpush1.msra.mxu0 %v551
      %603 = vmatprep.subr.mxu0 0.0
      %604 = vmatpush1.msra.mxu0 %v552
      %605 = vmatprep.subr.mxu0 0.0
      %606 = vmatpush1.msra.mxu0 %v553
      %607 = vmatprep.subr.mxu0 0.0
      %608 = vmatpush1.msra.mxu0 %v554
      %609 = vmatprep.subr.mxu0 0.0
      %610 = vmatpush1.msra.mxu0 %v555
      %611 = vmatprep.subr.mxu0 0.0
      %612 = vmatpush1.msra.mxu0 %v556
      %613 = vmatprep.subr.mxu0 0.0
      %614 = vmatpush1.msra.mxu0 %v557
      %615 = vmatprep.subr.mxu0 0.0
      %616 = vmatpush1.msra.mxu0 %v558
      %617 = vmatprep.subr.mxu0 0.0
      %618 = vmatpush1.msra.mxu0 %v559
      %619 = vmatprep.subr.mxu0 0.0
      %620 = vmatpush1.msra.mxu0 %v560
      %621 = vmatprep.subr.mxu0 0.0
      %622 = vmatpush1.msra.mxu0 %v561
      %623 = vmatprep.subr.mxu0 0.0
      %624 = vmatpush1.msra.mxu0 %v562
      %625 = vmatprep.subr.mxu0 0.0
      %626 = vmatpush1.msra.mxu0 %v563
      %627 = vmatprep.subr.mxu0 0.0
      %628 = vmatpush1.msra.mxu0 %v564
      %629 = vmatprep.mubr.f32.mxu0 %v532
      %630 = vmatmul.mubr.f32.gmra.mrb[0].mxu0 %v531
      %v631 = vpop.f32.mrb[0].mxu0
      %v632 = vadd.f32 0.0, %v631
      %v633 = vpop.f32.mrb[0].mxu0
      %634 = vdwg.mxu0
      %vm635 = vcmask 72704
      %636 = vst.msk [vmem:[#allocation3] sm:$0xff] %vm635, 0.0
      %vm637 = vcmask 671304
      %638 = vst.msk [vmem:[#allocation3] sm:$0xff] %vm637, 0.0
      %640 = vrot.lane.b32.xlu0 %v632, 9
      %v641 = vpop.permute.xlu0 %640
      %vm643 = vcmask 597064
      %644 = vst.msk [vmem:[#allocation3] sm:$0xff] %vm643, %v641
      %v645 = vand.u32 %v271, 7
      %vm646 = vcmp.ge.s32.totalorder %v645, 1
      %v647 = vsel %vm646, 1, 0
      %vm648 = vcmp.eq.s32.totalorder %v647, 1
      %vm649 = vcmp.le.s32.totalorder %v645, 6
      %v650 = vsel %vm649, 1, 0
      %vm651 = vcmp.eq.s32.totalorder %v650, 1
      %v652 = vld [vmem:[#allocation3] sm:$0xff]
      %v653 = vsel %vm648, %v652, 0.0
      %655 = vrot.lane.b32.xlu0 %v652, 126
      %v656 = vpop.permute.xlu0 %655
      %v658 = vsel %vm651, %v656, 0.0
      %659 = vrot.lane.b32.xlu0 %v652, 120
      %v660 = vpop.permute.xlu0 %659
      %v662 = vsel %vm648, %v660, 0.0
      %663 = vrot.lane.b32.xlu0 %v652, 118
      %v664 = vpop.permute.xlu0 %663
      %v666 = vsel %vm651, %v664, 0.0
      %667 = vrot.lane.b32.xlu0 %v652, 112
      %v668 = vpop.permute.xlu0 %667
      %v670 = vsel %vm648, %v668, 0.0
      %671 = vrot.lane.b32.xlu0 %v652, 110
      %v672 = vpop.permute.xlu0 %671
      %v674 = vsel %vm651, %v672, 0.0
      %675 = vrot.lane.b32.xlu0 %v652, 127
      %v676 = vpop.permute.xlu0 %675
      %678 = vrot.lane.b32.xlu0 %v652, 119
      %v679 = vpop.permute.xlu0 %678
      %681 = vrot.lane.b32.xlu0 %v652, 111
      %v682 = vpop.permute.xlu0 %681
      %v684 = vld [vmem:[%s3] sm:$0xff]
      %v685 = vld [vmem:[%s3 + $0x8] sm:$0xff]
      %v686 = vld [vmem:[%s4] sm:$0xff]
      %v687 = vld [vmem:[%s4 + $0x8] sm:$0xff]
      %689 = vset.pattern.permute.xlu0 0
      %690 = vperm.xlu0 %689, %v686
      %v691 = vpop.permute.xlu0 %690
      %694 = vset.pattern.permute.xlu0 0
      %695 = vperm.xlu0 %694, %v687
      %v696 = vpop.permute.xlu0 %695
      %vm698 = vcmask 588800
      %v700 = vsel %vm698, %v684, 0
      %v703 = vsel %vm698, %v685, 0
      %705 = vmatprep.subr.mxu0 0.0
      %706 = vmatpush1.msra.mxu0 %v653
      %707 = vmatprep.subr.mxu0 0.0
      %708 = vmatpush1.msra.mxu0 %v676
      %709 = vmatprep.subr.mxu0 0.0
      %710 = vmatpush1.msra.mxu0 %v658
      %711 = vmatprep.subr.mxu0 0.0
      %712 = vmatpush1.msra.mxu0 %v662
      %713 = vmatprep.subr.mxu0 0.0
      %714 = vmatpush1.msra.mxu0 %v679
      %715 = vmatprep.subr.mxu0 0.0
      %716 = vmatpush1.msra.mxu0 %v666
      %717 = vmatprep.subr.mxu0 0.0
      %718 = vmatpush1.msra.mxu0 %v670
      %719 = vmatprep.subr.mxu0 0.0
      %720 = vmatpush1.msra.mxu0 %v682
      %721 = vmatprep.subr.mxu0 0.0
      %722 = vmatpush1.msra.mxu0 %v674
      %723 = vmatprep.subr.mxu0 0.0
      %724 = vmatpush1.msra.mxu0 0.0
      %725 = vmatprep.subr.mxu0 0.0
      %726 = vmatpush1.msra.mxu0 0.0
      %727 = vmatprep.subr.mxu0 0.0
      %728 = vmatpush1.msra.mxu0 0.0
      %729 = vmatprep.subr.mxu0 0.0
      %730 = vmatpush1.msra.mxu0 0.0
      %731 = vmatprep.subr.mxu0 0.0
      %732 = vmatpush1.msra.mxu0 0.0
      %733 = vmatprep.subr.mxu0 0.0
      %734 = vmatpush1.msra.mxu0 0.0
      %735 = vmatprep.subr.mxu0 0.0
      %736 = vmatpush1.msra.mxu0 0.0
      %737 = vmatprep.subr.mxu0 0.0
      %738 = vmatpush1.msra.mxu0 0.0
      %739 = vmatprep.subr.mxu0 0.0
      %740 = vmatpush1.msra.mxu0 0.0
      %741 = vmatprep.subr.mxu0 0.0
      %742 = vmatpush1.msra.mxu0 0.0
      %743 = vmatprep.subr.mxu0 0.0
      %744 = vmatpush1.msra.mxu0 0.0
      %745 = vmatprep.subr.mxu0 0.0
      %746 = vmatpush1.msra.mxu0 0.0
      %747 = vmatprep.subr.mxu0 0.0
      %748 = vmatpush1.msra.mxu0 0.0
      %749 = vmatprep.subr.mxu0 0.0
      %750 = vmatpush1.msra.mxu0 0.0
      %751 = vmatprep.subr.mxu0 0.0
      %752 = vmatpush1.msra.mxu0 0.0
      %753 = vmatprep.subr.mxu0 0.0
      %754 = vmatpush1.msra.mxu0 0.0
      %755 = vmatprep.subr.mxu0 0.0
      %756 = vmatpush1.msra.mxu0 0.0
      %757 = vmatprep.subr.mxu0 0.0
      %758 = vmatpush1.msra.mxu0 0.0
      %759 = vmatprep.subr.mxu0 0.0
      %760 = vmatpush1.msra.mxu0 0.0
      %761 = vmatprep.subr.mxu0 0.0
      %762 = vmatpush1.msra.mxu0 0.0
      %763 = vmatprep.subr.mxu0 0.0
      %764 = vmatpush1.msra.mxu0 0.0
      %765 = vmatprep.subr.mxu0 0.0
      %766 = vmatpush1.msra.mxu0 0.0
      %767 = vmatprep.subr.mxu0 0.0
      %768 = vmatpush1.msra.mxu0 0.0
      %769 = vmatprep.mubr.f32.mxu0 0.0
      %770 = vmatmul.mubr.f32.gmra.mrb[0].mxu0 %v700
      %v771 = vpop.f32.mrb[0].mxu0
      %v772 = vadd.f32 %v691, %v771
      %v773 = vpop.f32.mrb[0].mxu0
      %774 = vmatprep.mubr.f32.mxu0 0.0
      %775 = vmatmul.mubr.f32.gmra.mrb[0].mxu0 %v703
      %v776 = vpop.f32.mrb[0].mxu0
      %v777 = vadd.f32 %v696, %v776
      %v778 = vpop.f32.mrb[0].mxu0
      %779 = vdwg.mxu0
      %vm780 = vcmask 523264
      %781 = vst.msk [vmem:[%s251] sm:$0xff] %vm780, %v772
      %782 = vst.msk [vmem:[%s251 + $0x8] sm:$0xff] %vm780, %v777
      %p783 = scmp.lt.s32.totalorder %s17, 1
      %s784 = scalar_select %p783, %s17, 1
      %s785 = smul.addr %s784, 2
      %s786 = smul.addr %s785, 8
      %s787 = scalar_lea.vmem %s6, %s786
      // Predicated region
      $region45: #{feedback48_features.1} parent=43 // pred_check
        %p788 = pneg %p166
      $region46: #{feedback48_features.1} parent=43 // pred_check_branch
        %790 = sbr.rel (%p788) target = $region48
      $region47: #{feedback48_features.1} parent=43 // pred_region
        _
      $region48: #{feedback48_features.1} parent=43 // pred_fallthru
        _
    $region44: #{feedback48_features.1} parent=5 // pred_fallthru
      _
    %p791 = scmp.le.s32.totalorder 2, %s12
    // Predicated region
    $region49: #{feedback48_features.1} parent=5 // pred_check
      %p792 = pneg %p791
    $region50: #{feedback48_features.1} parent=5 // pred_check_branch
      %794 = sbr.rel (%p792) target = $region52
    $region51: #{feedback48_features.1} parent=5 // pred_region
      %s795 = ssub.s32 %s12, 2
      // Predicated region
      $region53: #{feedback48_features.1} parent=51 // pred_check
        %p796 = pneg %p172
      $region54: #{feedback48_features.1} parent=51 // pred_check_branch
        %798 = sbr.rel (%p796) target = $region56
      $region55: #{feedback48_features.1} parent=51 // pred_region
        %p799 = scmp.lt.s32.totalorder %s18, 1
        %s800 = scalar_select %p799, %s18, 1
        %s801 = smul.addr %s800, 2
        %s802 = smul.addr %s801, 8
        %s803 = scalar_lea.vmem %s6, %s802
      $region56: #{feedback48_features.1} parent=51 // pred_fallthru
        _
    $region52: #{feedback48_features.1} parent=5 // pred_fallthru
      _
  $region6: #{feedback48_features.1} parent=0 // loop_footer
    %s16 = sadd.s32 1, %s12
  $region7: #{feedback48_features.1} parent=0 // loop_footer_branch
    %11 = sbr.rel target = $region3
  $region8: #{feedback48_features.1} parent=0 // loop_exit
    _

</llo_original>
